<compile_context>
chip_gen: v5e
topology: v5e:2x2
jax: 0.10.0
libtpu: 0.0.40
codegen_flags: <defaults>
</compile_context>

<pallas_src>
import functools

import jax
import jax.numpy as jnp
from jax.experimental import pallas as pl
from jax.experimental.pallas import tpu as pltpu

N_STUDENT_VIEWS = 6   # student.chunk(2 + 4) -> 2 global + 4 local crops
N_TEACHER_VIEWS = 2   # teacher.chunk(2)     -> 2 global crops
NB_LOSS_TERMS = N_TEACHER_VIEWS * (N_STUDENT_VIEWS - 1)   # i != j pairs


def _dino_loss_kernel(temps_ref, student_ref, teacher_ref, center_ref,
                      loss_rows_ref, tsum_ref):
    """One grid step handles a (tb)-row slice of every view.

    Emits per-row loss contributions and a per-step teacher row-sum partial;
    the final tiny reductions + center EMA happen in plain JAX so the grid
    axis carries no state and can be sharded across TensorCores.
    """
    inv_s_temp = 1.0 / temps_ref[0]      # scalar-unit reciprocals, reused as muls
    inv_t_temp = 1.0 / temps_ref[1]
    center = center_ref[...]             # (1, K) f32

    # ---- Teacher views: un-normalized softmax numerators + denominators ----
    t_exps, t_dens = [], []
    t_rowsum = None
    for j in range(N_TEACHER_VIEWS):
        t_j = teacher_ref[j].astype(jnp.float32)                     # (tb, K)
        t_rowsum = t_j if t_rowsum is None else t_rowsum + t_j
        t_logits = (t_j - center) * inv_t_temp
        t_max = jnp.max(t_logits, axis=-1, keepdims=True)
        t_exp = jnp.exp(t_logits - t_max)                            # (tb, K)
        t_exps.append(t_exp)
        t_dens.append(jnp.sum(t_exp, axis=-1, keepdims=True))        # (tb, 1)

    # ---- Student views, streamed (no (6, tb, K) f32 materialization) ----
    # Aggregation identity (10 cross terms -> 2 passes):
    #   loss_rows[r] = sum_j (1/t_den_j[r]) *
    #                  ( sum_k t_exp_j*s_logp_j - sum_k t_exp_j*s_sum )
    # with s_sum = sum_i s_logp_i.
    s_sum = None
    direct = [None] * N_TEACHER_VIEWS
    for i in range(N_STUDENT_VIEWS):
        s_i = student_ref[i].astype(jnp.float32) * inv_s_temp        # (tb, K)
        s_max = jnp.max(s_i, axis=-1, keepdims=True)
        s_shift = s_i - s_max
        s_logden = jnp.log(jnp.sum(jnp.exp(s_shift), axis=-1, keepdims=True))
        s_logp = s_shift - s_logden                                  # (tb, K)
        s_sum = s_logp if s_sum is None else s_sum + s_logp
        if i < N_TEACHER_VIEWS:
            direct[i] = jnp.sum(t_exps[i] * s_logp, axis=-1, keepdims=True)

    # ---- Combine; softmax normalization deferred to an exact per-row divide.
    row_contrib = jnp.zeros_like(t_dens[0])                          # (tb, 1)
    for j in range(N_TEACHER_VIEWS):
        cross_j = jnp.sum(t_exps[j] * s_sum, axis=-1, keepdims=True)
        row_contrib = row_contrib + (direct[j] - cross_j) / t_dens[j]
    loss_rows_ref[...] = row_contrib

    # ---- Teacher row-sum partial for the center EMA.
    tb, K = t_rowsum.shape
    if tsum_ref.shape[1] == 8:
        # Keep 8 sublanes: plain VPU adds, no per-step cross-sublane reduce.
        tsum_ref[0] = jnp.sum(t_rowsum.reshape(tb // 8, 8, K), axis=0)
    else:
        tsum_ref[0] = jnp.sum(t_rowsum, axis=0, keepdims=True)


def _vmem_limit_bytes():
    """Generation-aware scoped-VMEM limit (~75% of physical VMEM per core)."""
    try:
        info = pltpu.get_tpu_info()
        cap = int(getattr(info, "vmem_capacity_bytes", 0) or 0)
        if cap > 0:
            return (cap * 3) // 4
    except Exception:
        pass
    return 48 * 1024 * 1024   # safe on v7x (64 MiB physical); fine everywhere


def _pick_batch_tile(B, K, itemsize, vmem_budget_bytes):
    """Largest per-view batch tile whose per-step working set fits the budget.

    Per batch-row bytes = double-buffered input blocks (8 views, 2 buffers)
    + ~8 live f32 (row, K) intermediates (teacher/t_exp for both views,
    s_sum, per-view cast/exp/logp temporaries).
    """
    per_row = 2 * (N_STUDENT_VIEWS + N_TEACHER_VIEWS) * K * itemsize + 8 * K * 4
    cap = vmem_budget_bytes // max(per_row, 1)
    if B <= cap:
        return B
    # Largest divisor of B that fits; prefer multiples of 16 (bf16 sublane packing).
    for align in (16, 8):
        best = 0
        for tb in range(align, min(cap, B) + 1, align):
            if B % tb == 0:
                best = tb
        if best:
            return best
    # TODO(synk): add a K-tiled / two-pass softmax path for huge K instead of failing.
    raise ValueError(
        f"DINOLoss Pallas kernel: no batch tile of B={B} fits the "
        f"{vmem_budget_bytes}-byte VMEM budget at K={K}.")


@functools.partial(jax.jit, static_argnames=("tb", "vmem_limit"))
def _dino_forward(student3, teacher3, center, temps, *, tb, vmem_limit):
    _, B, K = student3.shape
    grid_steps = B // tb
    sublane_rows = 8 if tb % 8 == 0 else 1

    loss_rows, tsum_parts = pl.pallas_call(
        _dino_loss_kernel,
        grid=(grid_steps,),
        out_shape=(
            jax.ShapeDtypeStruct((B, 1), jnp.float32),                    # per-row loss
            jax.ShapeDtypeStruct((grid_steps, sublane_rows, K), jnp.float32),
        ),
        in_specs=[
            pl.BlockSpec(memory_space=pltpu.MemorySpace.SMEM),            # temps
            pl.BlockSpec((N_STUDENT_VIEWS, tb, K), lambda i: (0, i, 0)),
            pl.BlockSpec((N_TEACHER_VIEWS, tb, K), lambda i: (0, i, 0)),
            pl.BlockSpec((1, K), lambda i: (0, 0)),                       # center
        ],
        out_specs=(
            pl.BlockSpec((tb, 1), lambda i: (i, 0)),                      # loss rows
            pl.BlockSpec((1, sublane_rows, K), lambda i: (i, 0, 0)),      # tsum parts
        ),
        compiler_params=pltpu.CompilerParams(
            # No carried state -> batch axis is parallel (splits across v7x's 2 TCs).
            dimension_semantics=("parallel",),
            vmem_limit_bytes=vmem_limit,
        ),
    )(temps, student3, teacher3, center)

    b_f = jnp.float32(B)
    loss = jnp.sum(loss_rows) / (b_f * NB_LOSS_TERMS)
    teacher_sum = jnp.sum(tsum_parts, axis=(0, 1))                        # (K,)
    momentum = temps[2]
    new_center = (center * momentum
                  + (teacher_sum / (b_f * N_TEACHER_VIEWS))[None, :] * (1.0 - momentum))
    # TODO(synk): torch.distributed all_reduce of new_center omitted (single-device).
    return loss, new_center


class DINOLoss:
    def __init__(self, nb_prototypes, student_temp, teacher_temp,
                 teacher_temp_warmup, teacher_temp_warmup_epochs,
                 center_momentum=0.9, input_dtype=jnp.bfloat16):
        self.epoch = 0
        self.student_temp = float(student_temp)
        self.teacher_temp = float(teacher_temp)
        self.teacher_temp_warmup = jnp.linspace(
            teacher_temp_warmup, teacher_temp, teacher_temp_warmup_epochs)
        self.center_momentum = float(center_momentum)
        self.center = jnp.zeros((1, nb_prototypes), jnp.float32)
        self.input_dtype = input_dtype   # HBM/DMA dtype only; compute is f32

    def _get_teacher_temp(self):
        if self.epoch < self.teacher_temp_warmup.shape[0]:
            return float(self.teacher_temp_warmup[self.epoch])
        return self.teacher_temp

    def __call__(self, student, teacher, batch_tile=None):
        K = student.shape[-1]
        B = teacher.shape[0] // N_TEACHER_VIEWS
        assert student.shape[0] == N_STUDENT_VIEWS * B
        assert teacher.shape[0] == N_TEACHER_VIEWS * B

        # Views are contiguous row chunks -> expose them as a leading axis.
        # Cast storage to bf16 (halves HBM traffic); kernel upcasts to f32.
        student3 = student.reshape(N_STUDENT_VIEWS, B, K).astype(self.input_dtype)
        teacher3 = teacher.reshape(N_TEACHER_VIEWS, B, K).astype(self.input_dtype)

        vmem_limit = _vmem_limit_bytes()
        if batch_tile is not None:
            tb = batch_tile
        else:
            tb = _pick_batch_tile(B, K, jnp.dtype(self.input_dtype).itemsize,
                                  (vmem_limit * 3) // 4)
        assert B % tb == 0 and (tb % 8 == 0 or tb == B), (B, tb)

        temps = jnp.array(
            [self.student_temp, self._get_teacher_temp(), self.center_momentum],
            dtype=jnp.float32)

        loss, new_center = _dino_forward(
            student3, teacher3, self.center, temps, tb=tb, vmem_limit=vmem_limit)

        self.center = new_center
        return loss


def _reference(student, teacher, center, s_temp, t_temp, momentum):
    """Pure-JAX reference matching the PyTorch module."""
    s = student / s_temp
    s_chunks = jnp.split(s, N_STUDENT_VIEWS, axis=0)
    t_probs = jax.nn.softmax((teacher - center) / t_temp, axis=-1)
    t_chunks = jnp.split(t_probs, N_TEACHER_VIEWS, axis=0)
    loss = 0.0
    n = 0
    for j in range(N_TEACHER_VIEWS):
        for i in range(N_STUDENT_VIEWS):
            if i == j:
                continue
            logp = jax.nn.log_softmax(s_chunks[i], axis=-1)
            loss = loss + jnp.mean(jnp.sum(-t_chunks[j] * logp, axis=-1))
            n += 1
    loss = loss / n
    new_center = jnp.sum(teacher, axis=0, keepdims=True) / teacher.shape[0]
    new_center = center * momentum + new_center * (1.0 - momentum)
    return loss, new_center


if __name__ == "__main__":
    key = jax.random.PRNGKey(0)
    k1, k2 = jax.random.split(key)

    B = 16    # per-view batch size (batch_tile=8 -> 2 grid steps)
    K = 128   # nb_prototypes, lane-aligned

    student = jax.random.normal(k1, (N_STUDENT_VIEWS * B, K), jnp.float32)
    teacher = jax.random.normal(k2, (N_TEACHER_VIEWS * B, K), jnp.float32)

    loss_mod = DINOLoss(
        nb_prototypes=K,
        student_temp=0.1,
        teacher_temp=0.04,
        teacher_temp_warmup=0.07,
        teacher_temp_warmup_epochs=10,
        center_momentum=0.9,
    )

    center_before = loss_mod.center
    t_temp = loss_mod._get_teacher_temp()

    loss = loss_mod(student, teacher, batch_tile=8)
    jax.block_until_ready(loss)
    jax.block_until_ready(loss_mod.center)

    # Reference on the bf16-rounded inputs (what the kernel actually consumes).
    student_rt = student.astype(jnp.bfloat16).astype(jnp.float32)
    teacher_rt = teacher.astype(jnp.bfloat16).astype(jnp.float32)
    ref_loss, ref_center = _reference(
        student_rt, teacher_rt, center_before, loss_mod.student_temp, t_temp,
        loss_mod.center_momentum)

    assert jnp.allclose(loss, ref_loss, rtol=1e-3, atol=1e-4), (loss, ref_loss)
    assert jnp.allclose(loss_mod.center, ref_center, rtol=1e-4, atol=1e-5)

    print("KERNEL_OK")
</pallas_src>

<mosaic_0001>
module attributes {stable_mosaic.version = 11 : i64} {
  func.func @_dino_loss_kernel(%arg0: i32, %arg1: memref<3xf32, #tpu.memory_space<smem>>, %arg2: memref<6x8x128xbf16, #tpu.memory_space<vmem>>, %arg3: memref<2x8x128xbf16, #tpu.memory_space<vmem>>, %arg4: memref<1x128xf32, #tpu.memory_space<vmem>>, %arg5: memref<8x1xf32, #tpu.memory_space<vmem>>, %arg6: memref<1x8x128xf32, #tpu.memory_space<vmem>>) attributes {dimension_semantics = [#tpu.dimension_semantics<parallel>], iteration_bounds = array<i64: 2>, scalar_prefetch = 0 : i64, scratch_operands = 0 : i64, tpu.core_type = #tpu.core_type<tc>, window_params = [{transform_indices = @transform_0, window_bounds = array<i64: 3>}, {transform_indices = @transform_1, window_bounds = array<i64: 6, 8, 128>}, {transform_indices = @transform_2, window_bounds = array<i64: 2, 8, 128>}, {pipeline_mode = #tpu.pipeline_mode<synchronous>, transform_indices = @transform_3, window_bounds = array<i64: 1, 128>}, {transform_indices = @transform_4, window_bounds = array<i64: 8, 1>}, {transform_indices = @transform_5, window_bounds = array<i64: 1, 8, 128>}]} {
    %c0 = arith.constant 0 : index
    %0 = memref.load %arg1[%c0] : memref<3xf32, #tpu.memory_space<smem>>
    %cst = arith.constant 1.000000e+00 : f32
    %1 = arith.divf %cst, %0 : f32
    %c1 = arith.constant 1 : index
    %2 = memref.load %arg1[%c1] : memref<3xf32, #tpu.memory_space<smem>>
    %cst_0 = arith.constant 1.000000e+00 : f32
    %3 = arith.divf %cst_0, %2 : f32
    %c0_1 = arith.constant 0 : index
    %c0_2 = arith.constant 0 : index
    %4 = vector.load %arg4[%c0_1, %c0_2] : memref<1x128xf32, #tpu.memory_space<vmem>>, vector<1x128xf32>
    %c0_3 = arith.constant 0 : index
    %c0_4 = arith.constant 0 : index
    %c0_5 = arith.constant 0 : index
    %5 = vector.load %arg3[%c0_3, %c0_4, %c0_5] : memref<2x8x128xbf16, #tpu.memory_space<vmem>>, vector<1x8x128xbf16>
    %6 = vector.shape_cast %5 : vector<1x8x128xbf16> to vector<8x128xbf16>
    %7 = arith.extf %6 : vector<8x128xbf16> to vector<8x128xf32>
    %8 = vector.broadcast %4 : vector<1x128xf32> to vector<8x128xf32>
    %9 = arith.subf %7, %8 : vector<8x128xf32>
    %10 = vector.broadcast %3 : f32 to vector<8x128xf32>
    %11 = arith.mulf %9, %10 : vector<8x128xf32>
    %cst_6 = arith.constant dense<0xFF800000> : vector<8xf32>
    %12 = vector.multi_reduction <maximumf>, %11, %cst_6 [1] : vector<8x128xf32> to vector<8xf32>
    %13 = vector.shape_cast %12 : vector<8xf32> to vector<8x1xf32>
    %14 = vector.broadcast %13 : vector<8x1xf32> to vector<8x128xf32>
    %15 = arith.subf %11, %14 : vector<8x128xf32>
    %16 = math.exp %15 : vector<8x128xf32>
    %cst_7 = arith.constant dense<0.000000e+00> : vector<8xf32>
    %17 = vector.multi_reduction <add>, %16, %cst_7 [1] : vector<8x128xf32> to vector<8xf32>
    %18 = vector.shape_cast %17 : vector<8xf32> to vector<8x1xf32>
    %c1_8 = arith.constant 1 : index
    %c0_9 = arith.constant 0 : index
    %c0_10 = arith.constant 0 : index
    %19 = vector.load %arg3[%c1_8, %c0_9, %c0_10] : memref<2x8x128xbf16, #tpu.memory_space<vmem>>, vector<1x8x128xbf16>
    %20 = vector.shape_cast %19 : vector<1x8x128xbf16> to vector<8x128xbf16>
    %21 = arith.extf %20 : vector<8x128xbf16> to vector<8x128xf32>
    %22 = arith.addf %7, %21 : vector<8x128xf32>
    %23 = vector.broadcast %4 : vector<1x128xf32> to vector<8x128xf32>
    %24 = arith.subf %21, %23 : vector<8x128xf32>
    %25 = vector.broadcast %3 : f32 to vector<8x128xf32>
    %26 = arith.mulf %24, %25 : vector<8x128xf32>
    %cst_11 = arith.constant dense<0xFF800000> : vector<8xf32>
    %27 = vector.multi_reduction <maximumf>, %26, %cst_11 [1] : vector<8x128xf32> to vector<8xf32>
    %28 = vector.shape_cast %27 : vector<8xf32> to vector<8x1xf32>
    %29 = vector.broadcast %28 : vector<8x1xf32> to vector<8x128xf32>
    %30 = arith.subf %26, %29 : vector<8x128xf32>
    %31 = math.exp %30 : vector<8x128xf32>
    %cst_12 = arith.constant dense<0.000000e+00> : vector<8xf32>
    %32 = vector.multi_reduction <add>, %31, %cst_12 [1] : vector<8x128xf32> to vector<8xf32>
    %33 = vector.shape_cast %32 : vector<8xf32> to vector<8x1xf32>
    %c0_13 = arith.constant 0 : index
    %c0_14 = arith.constant 0 : index
    %c0_15 = arith.constant 0 : index
    %34 = vector.load %arg2[%c0_13, %c0_14, %c0_15] : memref<6x8x128xbf16, #tpu.memory_space<vmem>>, vector<1x8x128xbf16>
    %35 = vector.shape_cast %34 : vector<1x8x128xbf16> to vector<8x128xbf16>
    %36 = arith.extf %35 : vector<8x128xbf16> to vector<8x128xf32>
    %37 = vector.broadcast %1 : f32 to vector<8x128xf32>
    %38 = arith.mulf %36, %37 : vector<8x128xf32>
    %cst_16 = arith.constant dense<0xFF800000> : vector<8xf32>
    %39 = vector.multi_reduction <maximumf>, %38, %cst_16 [1] : vector<8x128xf32> to vector<8xf32>
    %40 = vector.shape_cast %39 : vector<8xf32> to vector<8x1xf32>
    %41 = vector.broadcast %40 : vector<8x1xf32> to vector<8x128xf32>
    %42 = arith.subf %38, %41 : vector<8x128xf32>
    %43 = math.exp %42 : vector<8x128xf32>
    %cst_17 = arith.constant dense<0.000000e+00> : vector<8xf32>
    %44 = vector.multi_reduction <add>, %43, %cst_17 [1] : vector<8x128xf32> to vector<8xf32>
    %45 = vector.shape_cast %44 : vector<8xf32> to vector<8x1xf32>
    %46 = math.log %45 : vector<8x1xf32>
    %47 = vector.broadcast %46 : vector<8x1xf32> to vector<8x128xf32>
    %48 = arith.subf %42, %47 : vector<8x128xf32>
    %49 = arith.mulf %16, %48 : vector<8x128xf32>
    %cst_18 = arith.constant dense<0.000000e+00> : vector<8xf32>
    %50 = vector.multi_reduction <add>, %49, %cst_18 [1] : vector<8x128xf32> to vector<8xf32>
    %51 = vector.shape_cast %50 : vector<8xf32> to vector<8x1xf32>
    %c1_19 = arith.constant 1 : index
    %c0_20 = arith.constant 0 : index
    %c0_21 = arith.constant 0 : index
    %52 = vector.load %arg2[%c1_19, %c0_20, %c0_21] : memref<6x8x128xbf16, #tpu.memory_space<vmem>>, vector<1x8x128xbf16>
    %53 = vector.shape_cast %52 : vector<1x8x128xbf16> to vector<8x128xbf16>
    %54 = arith.extf %53 : vector<8x128xbf16> to vector<8x128xf32>
    %55 = vector.broadcast %1 : f32 to vector<8x128xf32>
    %56 = arith.mulf %54, %55 : vector<8x128xf32>
    %cst_22 = arith.constant dense<0xFF800000> : vector<8xf32>
    %57 = vector.multi_reduction <maximumf>, %56, %cst_22 [1] : vector<8x128xf32> to vector<8xf32>
    %58 = vector.shape_cast %57 : vector<8xf32> to vector<8x1xf32>
    %59 = vector.broadcast %58 : vector<8x1xf32> to vector<8x128xf32>
    %60 = arith.subf %56, %59 : vector<8x128xf32>
    %61 = math.exp %60 : vector<8x128xf32>
    %cst_23 = arith.constant dense<0.000000e+00> : vector<8xf32>
    %62 = vector.multi_reduction <add>, %61, %cst_23 [1] : vector<8x128xf32> to vector<8xf32>
    %63 = vector.shape_cast %62 : vector<8xf32> to vector<8x1xf32>
    %64 = math.log %63 : vector<8x1xf32>
    %65 = vector.broadcast %64 : vector<8x1xf32> to vector<8x128xf32>
    %66 = arith.subf %60, %65 : vector<8x128xf32>
    %67 = arith.addf %48, %66 : vector<8x128xf32>
    %68 = arith.mulf %31, %66 : vector<8x128xf32>
    %cst_24 = arith.constant dense<0.000000e+00> : vector<8xf32>
    %69 = vector.multi_reduction <add>, %68, %cst_24 [1] : vector<8x128xf32> to vector<8xf32>
    %70 = vector.shape_cast %69 : vector<8xf32> to vector<8x1xf32>
    %c2 = arith.constant 2 : index
    %c0_25 = arith.constant 0 : index
    %c0_26 = arith.constant 0 : index
    %71 = vector.load %arg2[%c2, %c0_25, %c0_26] : memref<6x8x128xbf16, #tpu.memory_space<vmem>>, vector<1x8x128xbf16>
    %72 = vector.shape_cast %71 : vector<1x8x128xbf16> to vector<8x128xbf16>
    %73 = arith.extf %72 : vector<8x128xbf16> to vector<8x128xf32>
    %74 = vector.broadcast %1 : f32 to vector<8x128xf32>
    %75 = arith.mulf %73, %74 : vector<8x128xf32>
    %cst_27 = arith.constant dense<0xFF800000> : vector<8xf32>
    %76 = vector.multi_reduction <maximumf>, %75, %cst_27 [1] : vector<8x128xf32> to vector<8xf32>
    %77 = vector.shape_cast %76 : vector<8xf32> to vector<8x1xf32>
    %78 = vector.broadcast %77 : vector<8x1xf32> to vector<8x128xf32>
    %79 = arith.subf %75, %78 : vector<8x128xf32>
    %80 = math.exp %79 : vector<8x128xf32>
    %cst_28 = arith.constant dense<0.000000e+00> : vector<8xf32>
    %81 = vector.multi_reduction <add>, %80, %cst_28 [1] : vector<8x128xf32> to vector<8xf32>
    %82 = vector.shape_cast %81 : vector<8xf32> to vector<8x1xf32>
    %83 = math.log %82 : vector<8x1xf32>
    %84 = vector.broadcast %83 : vector<8x1xf32> to vector<8x128xf32>
    %85 = arith.subf %79, %84 : vector<8x128xf32>
    %86 = arith.addf %67, %85 : vector<8x128xf32>
    %c3 = arith.constant 3 : index
    %c0_29 = arith.constant 0 : index
    %c0_30 = arith.constant 0 : index
    %87 = vector.load %arg2[%c3, %c0_29, %c0_30] : memref<6x8x128xbf16, #tpu.memory_space<vmem>>, vector<1x8x128xbf16>
    %88 = vector.shape_cast %87 : vector<1x8x128xbf16> to vector<8x128xbf16>
    %89 = arith.extf %88 : vector<8x128xbf16> to vector<8x128xf32>
    %90 = vector.broadcast %1 : f32 to vector<8x128xf32>
    %91 = arith.mulf %89, %90 : vector<8x128xf32>
    %cst_31 = arith.constant dense<0xFF800000> : vector<8xf32>
    %92 = vector.multi_reduction <maximumf>, %91, %cst_31 [1] : vector<8x128xf32> to vector<8xf32>
    %93 = vector.shape_cast %92 : vector<8xf32> to vector<8x1xf32>
    %94 = vector.broadcast %93 : vector<8x1xf32> to vector<8x128xf32>
    %95 = arith.subf %91, %94 : vector<8x128xf32>
    %96 = math.exp %95 : vector<8x128xf32>
    %cst_32 = arith.constant dense<0.000000e+00> : vector<8xf32>
    %97 = vector.multi_reduction <add>, %96, %cst_32 [1] : vector<8x128xf32> to vector<8xf32>
    %98 = vector.shape_cast %97 : vector<8xf32> to vector<8x1xf32>
    %99 = math.log %98 : vector<8x1xf32>
    %100 = vector.broadcast %99 : vector<8x1xf32> to vector<8x128xf32>
    %101 = arith.subf %95, %100 : vector<8x128xf32>
    %102 = arith.addf %86, %101 : vector<8x128xf32>
    %c4 = arith.constant 4 : index
    %c0_33 = arith.constant 0 : index
    %c0_34 = arith.constant 0 : index
    %103 = vector.load %arg2[%c4, %c0_33, %c0_34] : memref<6x8x128xbf16, #tpu.memory_space<vmem>>, vector<1x8x128xbf16>
    %104 = vector.shape_cast %103 : vector<1x8x128xbf16> to vector<8x128xbf16>
    %105 = arith.extf %104 : vector<8x128xbf16> to vector<8x128xf32>
    %106 = vector.broadcast %1 : f32 to vector<8x128xf32>
    %107 = arith.mulf %105, %106 : vector<8x128xf32>
    %cst_35 = arith.constant dense<0xFF800000> : vector<8xf32>
    %108 = vector.multi_reduction <maximumf>, %107, %cst_35 [1] : vector<8x128xf32> to vector<8xf32>
    %109 = vector.shape_cast %108 : vector<8xf32> to vector<8x1xf32>
    %110 = vector.broadcast %109 : vector<8x1xf32> to vector<8x128xf32>
    %111 = arith.subf %107, %110 : vector<8x128xf32>
    %112 = math.exp %111 : vector<8x128xf32>
    %cst_36 = arith.constant dense<0.000000e+00> : vector<8xf32>
    %113 = vector.multi_reduction <add>, %112, %cst_36 [1] : vector<8x128xf32> to vector<8xf32>
    %114 = vector.shape_cast %113 : vector<8xf32> to vector<8x1xf32>
    %115 = math.log %114 : vector<8x1xf32>
    %116 = vector.broadcast %115 : vector<8x1xf32> to vector<8x128xf32>
    %117 = arith.subf %111, %116 : vector<8x128xf32>
    %118 = arith.addf %102, %117 : vector<8x128xf32>
    %c5 = arith.constant 5 : index
    %c0_37 = arith.constant 0 : index
    %c0_38 = arith.constant 0 : index
    %119 = vector.load %arg2[%c5, %c0_37, %c0_38] : memref<6x8x128xbf16, #tpu.memory_space<vmem>>, vector<1x8x128xbf16>
    %120 = vector.shape_cast %119 : vector<1x8x128xbf16> to vector<8x128xbf16>
    %121 = arith.extf %120 : vector<8x128xbf16> to vector<8x128xf32>
    %122 = vector.broadcast %1 : f32 to vector<8x128xf32>
    %123 = arith.mulf %121, %122 : vector<8x128xf32>
    %cst_39 = arith.constant dense<0xFF800000> : vector<8xf32>
    %124 = vector.multi_reduction <maximumf>, %123, %cst_39 [1] : vector<8x128xf32> to vector<8xf32>
    %125 = vector.shape_cast %124 : vector<8xf32> to vector<8x1xf32>
    %126 = vector.broadcast %125 : vector<8x1xf32> to vector<8x128xf32>
    %127 = arith.subf %123, %126 : vector<8x128xf32>
    %128 = math.exp %127 : vector<8x128xf32>
    %cst_40 = arith.constant dense<0.000000e+00> : vector<8xf32>
    %129 = vector.multi_reduction <add>, %128, %cst_40 [1] : vector<8x128xf32> to vector<8xf32>
    %130 = vector.shape_cast %129 : vector<8xf32> to vector<8x1xf32>
    %131 = math.log %130 : vector<8x1xf32>
    %132 = vector.broadcast %131 : vector<8x1xf32> to vector<8x128xf32>
    %133 = arith.subf %127, %132 : vector<8x128xf32>
    %134 = arith.addf %118, %133 : vector<8x128xf32>
    %cst_41 = arith.constant 0.000000e+00 : f32
    %135 = vector.broadcast %cst_41 : f32 to vector<8x1xf32>
    %136 = arith.mulf %16, %134 : vector<8x128xf32>
    %cst_42 = arith.constant dense<0.000000e+00> : vector<8xf32>
    %137 = vector.multi_reduction <add>, %136, %cst_42 [1] : vector<8x128xf32> to vector<8xf32>
    %138 = vector.shape_cast %137 : vector<8xf32> to vector<8x1xf32>
    %139 = arith.subf %51, %138 : vector<8x1xf32>
    %140 = arith.divf %139, %18 : vector<8x1xf32>
    %141 = arith.addf %135, %140 : vector<8x1xf32>
    %142 = arith.mulf %31, %134 : vector<8x128xf32>
    %cst_43 = arith.constant dense<0.000000e+00> : vector<8xf32>
    %143 = vector.multi_reduction <add>, %142, %cst_43 [1] : vector<8x128xf32> to vector<8xf32>
    %144 = vector.shape_cast %143 : vector<8xf32> to vector<8x1xf32>
    %145 = arith.subf %70, %144 : vector<8x1xf32>
    %146 = arith.divf %145, %33 : vector<8x1xf32>
    %147 = arith.addf %141, %146 : vector<8x1xf32>
    %c0_44 = arith.constant 0 : index
    %c0_45 = arith.constant 0 : index
    %148 = vector.load %arg5[%c0_44, %c0_45] : memref<8x1xf32, #tpu.memory_space<vmem>>, vector<8x1xf32>
    tpu.vector_store %arg5[%c0_44, %c0_45], %147 {strides = array<i32>} : memref<8x1xf32, #tpu.memory_space<vmem>>, vector<8x1xf32>,
    %149 = vector.shape_cast %22 : vector<8x128xf32> to vector<1x8x128xf32>
    %cst_46 = arith.constant dense<0.000000e+00> : vector<8x128xf32>
    %150 = vector.multi_reduction <add>, %149, %cst_46 [0] : vector<1x8x128xf32> to vector<8x128xf32>
    %c0_47 = arith.constant 0 : index
    %c0_48 = arith.constant 0 : index
    %c0_49 = arith.constant 0 : index
    %151 = vector.load %arg6[%c0_47, %c0_48, %c0_49] : memref<1x8x128xf32, #tpu.memory_space<vmem>>, vector<1x8x128xf32>
    %152 = vector.shape_cast %151 : vector<1x8x128xf32> to vector<8x128xf32>
    %153 = vector.shape_cast %150 : vector<8x128xf32> to vector<1x8x128xf32>
    tpu.vector_store %arg6[%c0_47, %c0_48, %c0_49], %153 {strides = array<i32>} : memref<1x8x128xf32, #tpu.memory_space<vmem>>, vector<1x8x128xf32>,
    return
  }
  func.func @transform_0(%arg0: i32) -> i32 {
    %c0_i32 = arith.constant 0 : i32
    %c0_i32_0 = arith.constant 0 : i32
    return %c0_i32 : i32
  }
  func.func @transform_1(%arg0: i32) -> (i32, i32, i32) {
    %c0_i32 = arith.constant 0 : i32
    %c0_i32_0 = arith.constant 0 : i32
    %c0_i32_1 = arith.constant 0 : i32
    return %c0_i32, %arg0, %c0_i32_0 : i32, i32, i32
  }
  func.func @transform_2(%arg0: i32) -> (i32, i32, i32) {
    %c0_i32 = arith.constant 0 : i32
    %c0_i32_0 = arith.constant 0 : i32
    %c0_i32_1 = arith.constant 0 : i32
    return %c0_i32, %arg0, %c0_i32_0 : i32, i32, i32
  }
  func.func @transform_3(%arg0: i32) -> (i32, i32) {
    %c0_i32 = arith.constant 0 : i32
    %c0_i32_0 = arith.constant 0 : i32
    %c0_i32_1 = arith.constant 0 : i32
    return %c0_i32, %c0_i32_0 : i32, i32
  }
  func.func @transform_4(%arg0: i32) -> (i32, i32) {
    %c0_i32 = arith.constant 0 : i32
    %c0_i32_0 = arith.constant 0 : i32
    return %arg0, %c0_i32 : i32, i32
  }
  func.func @transform_5(%arg0: i32) -> (i32, i32, i32) {
    %c0_i32 = arith.constant 0 : i32
    %c0_i32_0 = arith.constant 0 : i32
    %c0_i32_1 = arith.constant 0 : i32
    return %arg0, %c0_i32, %c0_i32_0 : i32, i32, i32
  }
}

</mosaic_0001>

<llo_original>
// kernel: _dino_forward.1
$region0: #{_dino_forward.1}
  #allocation0 [shape = 'u32[]', space=smem, size = 0x4, offset = 0x4, fixed_abs, tag = 'smem constant byte address 0x4 - core index']
  #allocation1 [shape = 'u32[72,128]{1,0:T(1,128)}', space=vmem, size = 0x9000, scoped, tag = 'internal scratch']
  %s0 = inlined_call_operand.hbm [shape: f32[3], index: 0, kind: input, shape index: {}]
  %s1 = inlined_call_operand.hbm [shape: bf16[6,16,128], index: 1, kind: input, shape index: {}]
  %s2 = inlined_call_operand.hbm [shape: bf16[2,16,128], index: 2, kind: input, shape index: {}]
  %s3 = inlined_call_operand.vmem [shape: f32[1,128], index: 3, kind: input, shape index: {}]
  %s4 = inlined_call_operand.vmem [shape: f32[16,1], index: 4, kind: output, shape index: {0}]
  %s5 = inlined_call_operand.vmem [shape: f32[2,8,128], index: 5, kind: output, shape index: {1}]
  %6 = xla_tuple %s4, %s5
  %s7 = sld [smem:[#allocation0]]
  $region69: #{_dino_forward.1} parent=0
    _
  %s9 = ssub.s32 1, %s7
  %s10 = scalar_select 0, %s9, %s7
  $region1: #{_dino_forward.1} parent=0
    #allocation2 [shape = 'u8[512]{0}', space=smem, size = 0x200, scoped, tag = 'input window, operand 0, single buffered']
    #allocation3 [shape = 's32[2]{0}', space=sflag, size = 0x8, scoped, tag = 'scoped memory for _dino_forward.1']
    #allocation4 [shape = 's32[2]{0}', space=sflag, size = 0x8, scoped, tag = 'scoped memory for _dino_forward.1']
    #allocation5 [shape = 'u8[24576]{0}', space=vmem, size = 0x6000, scoped, tag = 'input window, operand 1']
    #allocation6 [shape = 'u8[8192]{0}', space=vmem, size = 0x2000, scoped, tag = 'input window, operand 2']
    #allocation7 [shape = 's32[2]{0}', space=sflag, size = 0x8, scoped, tag = 'scoped memory for _dino_forward.1']
    %11 = vsyncpa [#allocation4], 0
    %12 = vsyncpa [#allocation3], 0
    %s13 = scalar_lea.sflag [#allocation3], 1
    %14 = vsyncpa %s13, 0
    %15 = vsyncpa [#allocation7], 0
    %s16 = scalar_lea.sflag [#allocation7], 1
    %17 = vsyncpa %s16, 0
    loop: start=0, step=1, limit=4
    $region2: #{_dino_forward.1} parent=1 // loop_pre_header
      _
    $region3: #{_dino_forward.1} parent=1 // loop_header
      %s19 = sphi 0, %s23
      %p20 = scmp.ge.s32.totalorder %s19, 4
      %s27 = sphi 0, %s27
      %s29 = sphi 0, %s27
      %s30 = sphi 0, %s29
      %s44 = sphi 0, %s30
      %s50 = sphi 0, %s52
      %s53 = sphi 0, %s50
      %s54 = sphi 0, %s53
      %s70 = sphi 0, %s54
      %s76 = sphi 0, %s78
      %s79 = sphi 0, %s76
      %s80 = sphi 0, %s79
      %s96 = sphi 0, %s80
      %s100 = sphi 0, %s100
      %s102 = sphi 0, %s100
      %s103 = sphi 0, %s102
      %s117 = sphi 0, %s103
      %s123 = sphi 0, %s125
      %s126 = sphi 0, %s123
      %s127 = sphi 0, %s126
      %s143 = sphi 0, %s127
      %s149 = sphi 0, %s151
      %s152 = sphi 0, %s149
      %s153 = sphi 0, %s152
      %s169 = sphi 0, %s153
    $region4: #{_dino_forward.1} parent=1 // loop_header_branch
      %22 = sbr.rel (%p20) target = $region8
    $region5: #{_dino_forward.1} parent=1 // loop_body
      %s24 = ssub.s32 %s19, 1
      %s25 = ssub.s32 %s19, 2
      %s26 = sadd.s32 %s19, 1
      %s28 = sadd.s32 %s27, 1
      %p31 = scmp.eq.s32.totalorder %s19, 1
      %p32 = scmp.ne.s32.totalorder %s27, %s29
      %p33 = scmp.eq.s32.totalorder %s19, 0
      %p34 = por %p32, %p33
      %p35 = scmp.ne.s32.totalorder %s27, %s29
      %p36 = scmp.eq.s32.totalorder %s24, 1
      %p37 = por %p35, %p36
      %p38 = scmp.ne.s32.totalorder %s29, %s30
      %p39 = scmp.eq.s32.totalorder %s24, 0
      %p40 = por %p38, %p39
      %p41 = scmp.ne.s32.totalorder %s29, %s30
      %p42 = scmp.eq.s32.totalorder %s25, 1
      %p43 = por %p41, %p42
      %p45 = scmp.ne.s32.totalorder %s30, %s44
      %p46 = scmp.eq.s32.totalorder %s25, 0
      %p47 = por %p45, %p46
      %s48 = ssub.s32 %s19, %s26
      %p49 = scmp.eq.s32.totalorder %s48, 0
      %s51 = sadd.s32 %s50, 1
      %s52 = scalar_select %p49, %s50, %s51
      %p55 = pneg %p49
      %p56 = scmp.eq.s32.totalorder %s19, 1
      %p57 = por %p55, %p56
      %p58 = scmp.ne.s32.totalorder %s50, %s53
      %p59 = scmp.eq.s32.totalorder %s19, 0
      %p60 = por %p58, %p59
      %p61 = scmp.ne.s32.totalorder %s50, %s53
      %p62 = scmp.eq.s32.totalorder %s24, 1
      %p63 = por %p61, %p62
      %p64 = scmp.ne.s32.totalorder %s53, %s54
      %p65 = scmp.eq.s32.totalorder %s24, 0
      %p66 = por %p64, %p65
      %p67 = scmp.ne.s32.totalorder %s53, %s54
      %p68 = scmp.eq.s32.totalorder %s25, 1
      %p69 = por %p67, %p68
      %p71 = scmp.ne.s32.totalorder %s54, %s70
      %p72 = scmp.eq.s32.totalorder %s25, 0
      %p73 = por %p71, %p72
      %s74 = ssub.s32 %s19, %s26
      %p75 = scmp.eq.s32.totalorder %s74, 0
      %s77 = sadd.s32 %s76, 1
      %s78 = scalar_select %p75, %s76, %s77
      %p81 = pneg %p75
      %p82 = scmp.eq.s32.totalorder %s19, 1
      %p83 = por %p81, %p82
      %p84 = scmp.ne.s32.totalorder %s76, %s79
      %p85 = scmp.eq.s32.totalorder %s19, 0
      %p86 = por %p84, %p85
      %p87 = scmp.ne.s32.totalorder %s76, %s79
      %p88 = scmp.eq.s32.totalorder %s24, 1
      %p89 = por %p87, %p88
      %p90 = scmp.ne.s32.totalorder %s79, %s80
      %p91 = scmp.eq.s32.totalorder %s24, 0
      %p92 = por %p90, %p91
      %p93 = scmp.ne.s32.totalorder %s79, %s80
      %p94 = scmp.eq.s32.totalorder %s25, 1
      %p95 = por %p93, %p94
      %p97 = scmp.ne.s32.totalorder %s80, %s96
      %p98 = scmp.eq.s32.totalorder %s25, 0
      %p99 = por %p97, %p98
      %s101 = sadd.s32 %s100, 1
      %p104 = scmp.eq.s32.totalorder %s19, 1
      %p105 = scmp.ne.s32.totalorder %s100, %s102
      %p106 = scmp.eq.s32.totalorder %s19, 0
      %p107 = por %p105, %p106
      %p108 = scmp.ne.s32.totalorder %s100, %s102
      %p109 = scmp.eq.s32.totalorder %s24, 1
      %p110 = por %p108, %p109
      %p111 = scmp.ne.s32.totalorder %s102, %s103
      %p112 = scmp.eq.s32.totalorder %s24, 0
      %p113 = por %p111, %p112
      %p114 = scmp.ne.s32.totalorder %s102, %s103
      %p115 = scmp.eq.s32.totalorder %s25, 1
      %p116 = por %p114, %p115
      %p118 = scmp.ne.s32.totalorder %s103, %s117
      %p119 = scmp.eq.s32.totalorder %s25, 0
      %p120 = por %p118, %p119
      %s121 = ssub.s32 %s19, %s26
      %p122 = scmp.eq.s32.totalorder %s121, 0
      %s124 = sadd.s32 %s123, 1
      %s125 = scalar_select %p122, %s123, %s124
      %p128 = pneg %p122
      %p129 = scmp.eq.s32.totalorder %s19, 1
      %p130 = por %p128, %p129
      %p131 = scmp.ne.s32.totalorder %s123, %s126
      %p132 = scmp.eq.s32.totalorder %s19, 0
      %p133 = por %p131, %p132
      %p134 = scmp.ne.s32.totalorder %s123, %s126
      %p135 = scmp.eq.s32.totalorder %s24, 1
      %p136 = por %p134, %p135
      %p137 = scmp.ne.s32.totalorder %s126, %s127
      %p138 = scmp.eq.s32.totalorder %s24, 0
      %p139 = por %p137, %p138
      %p140 = scmp.ne.s32.totalorder %s126, %s127
      %p141 = scmp.eq.s32.totalorder %s25, 1
      %p142 = por %p140, %p141
      %p144 = scmp.ne.s32.totalorder %s127, %s143
      %p145 = scmp.eq.s32.totalorder %s25, 0
      %p146 = por %p144, %p145
      %s147 = ssub.s32 %s19, %s26
      %p148 = scmp.eq.s32.totalorder %s147, 0
      %s150 = sadd.s32 %s149, 1
      %s151 = scalar_select %p148, %s149, %s150
      %p154 = pneg %p148
      %p155 = scmp.eq.s32.totalorder %s19, 1
      %p156 = por %p154, %p155
      %p157 = scmp.ne.s32.totalorder %s149, %s152
      %p158 = scmp.eq.s32.totalorder %s19, 0
      %p159 = por %p157, %p158
      %p160 = scmp.ne.s32.totalorder %s149, %s152
      %p161 = scmp.eq.s32.totalorder %s24, 1
      %p162 = por %p160, %p161
      %p163 = scmp.ne.s32.totalorder %s152, %s153
      %p164 = scmp.eq.s32.totalorder %s24, 0
      %p165 = por %p163, %p164
      %p166 = scmp.ne.s32.totalorder %s152, %s153
      %p167 = scmp.eq.s32.totalorder %s25, 1
      %p168 = por %p166, %p167
      %p170 = scmp.ne.s32.totalorder %s153, %s169
      %p171 = scmp.eq.s32.totalorder %s25, 0
      %p172 = por %p170, %p171
      %p173 = scmp.le.s32.totalorder 1, %s19
      %p174 = scmp.lt.s32.totalorder %s19, 3
      %p175 = pnand %p173, %p174
      %p176 = pneg %p175
      // Predicated region
      $region9: #{_dino_forward.1} parent=5 // pred_check
        _
      $region10: #{_dino_forward.1} parent=5 // pred_check_branch
        %178 = sbr.rel (%p175) target = $region12
      $region11: #{_dino_forward.1} parent=5 // pred_region
        %s179 = ssub.s32 %s19, 1
        // Predicated region
        $region13: #{_dino_forward.1} parent=11 // pred_check
          %p180 = pneg %p40
        $region14: #{_dino_forward.1} parent=11 // pred_check_branch
          %182 = sbr.rel (%p180) target = $region16
        $region15: #{_dino_forward.1} parent=11 // pred_region
          %184 = vsyncadd [#allocation4], 0
          %s186 = sshll.u32 %s0, 4
          %s187 = int_to_ptr.hbm [resolvable:$true] %s186
          %189 = dma.hbm_to_smem %s187, 16, [#allocation2], [#allocation4]
        $region16: #{_dino_forward.1} parent=11 // pred_fallthru
          _
        // Predicated region
        $region17: #{_dino_forward.1} parent=11 // pred_check
          %p190 = pneg %p113
        $region18: #{_dino_forward.1} parent=11 // pred_check_branch
          %192 = sbr.rel (%p190) target = $region20
        $region19: #{_dino_forward.1} parent=11 // pred_region
          _
        $region20: #{_dino_forward.1} parent=11 // pred_fallthru
          _
      $region12: #{_dino_forward.1} parent=5 // pred_fallthru
        _
      %p193 = scmp.lt.s32.totalorder %s19, 2
      // Predicated region
      $region21: #{_dino_forward.1} parent=5 // pred_check
        %p194 = pneg %p193
      $region22: #{_dino_forward.1} parent=5 // pred_check_branch
        %196 = sbr.rel (%p194) target = $region24
      $region23: #{_dino_forward.1} parent=5 // pred_region
        // Predicated region
        $region25: #{_dino_forward.1} parent=23 // pred_check
          %p197 = pneg %p60
        $region26: #{_dino_forward.1} parent=23 // pred_check_branch
          %199 = sbr.rel (%p197) target = $region28
        $region27: #{_dino_forward.1} parent=23 // pred_region
          %s200 = sand.u32 %s50, 1
          %s201 = scalar_lea.sflag [#allocation3], %s200
          %s202 = sand.u32 %s50, 1
          %s203 = smul.addr %s202, 24
          %s204 = scalar_lea.vmem [#allocation5], %s203
          %206 = vsyncadd %s201, 0
          %s207 = smul.addr %s19, 4
          %s208 = scalar_lea.hbm %s1, %s207
          %s209 = sshll.u32 %s208, 4
          %s210 = int_to_ptr.hbm [resolvable:$true] %s209
          %s211 = sshll.u32 %s204, 4
          %s212 = int_to_ptr.vmem [resolvable:$true] %s211
          %217 = dma.hbm_to_vmem [thread:$0]  %s210, 384, %s212, %s201, 128, 64, 4
        $region28: #{_dino_forward.1} parent=23 // pred_fallthru
          _
        // Predicated region
        $region29: #{_dino_forward.1} parent=23 // pred_check
          %p218 = pneg %p86
        $region30: #{_dino_forward.1} parent=23 // pred_check_branch
          %220 = sbr.rel (%p218) target = $region32
        $region31: #{_dino_forward.1} parent=23 // pred_region
          %s221 = sand.u32 %s76, 1
          %s222 = scalar_lea.sflag [#allocation7], %s221
          %s223 = sand.u32 %s76, 1
          %s224 = smul.addr %s223, 8
          %s225 = scalar_lea.vmem [#allocation6], %s224
          %227 = vsyncadd %s222, 0
          %s228 = smul.addr %s19, 4
          %s229 = scalar_lea.hbm %s2, %s228
          %s230 = sshll.u32 %s229, 4
          %s231 = int_to_ptr.hbm [resolvable:$true] %s230
          %s232 = sshll.u32 %s225, 4
          %s233 = int_to_ptr.vmem [resolvable:$true] %s232
          %238 = dma.hbm_to_vmem [thread:$0]  %s231, 128, %s233, %s222, 128, 64, 4
        $region32: #{_dino_forward.1} parent=23 // pred_fallthru
          _
      $region24: #{_dino_forward.1} parent=5 // pred_fallthru
        _
      %p239 = scmp.le.s32.totalorder 1, %s19
      %p240 = scmp.lt.s32.totalorder %s19, 3
      %p241 = pnand %p239, %p240
      %p242 = pneg %p241
      // Predicated region
      $region33: #{_dino_forward.1} parent=5 // pred_check
        _
      $region34: #{_dino_forward.1} parent=5 // pred_check_branch
        %244 = sbr.rel (%p241) target = $region36
      $region35: #{_dino_forward.1} parent=5 // pred_region
        %s245 = ssub.s32 %s19, 1
        // Predicated region
        $region37: #{_dino_forward.1} parent=35 // pred_check
          %p246 = pneg %p40
        $region38: #{_dino_forward.1} parent=35 // pred_check_branch
          %248 = sbr.rel (%p246) target = $region40
        $region39: #{_dino_forward.1} parent=35 // pred_region
          %250 = dma.done [#allocation4], 16
        $region40: #{_dino_forward.1} parent=35 // pred_fallthru
          _
        %s251 = sand.u32 %s53, 1
        %s252 = scalar_lea.sflag [#allocation3], %s251
        %s253 = sand.u32 %s53, 1
        %s254 = smul.addr %s253, 24
        %s255 = scalar_lea.vmem [#allocation5], %s254
        // Predicated region
        $region41: #{_dino_forward.1} parent=35 // pred_check
          %p256 = pneg %p66
        $region42: #{_dino_forward.1} parent=35 // pred_check_branch
          %258 = sbr.rel (%p256) target = $region44
        $region43: #{_dino_forward.1} parent=35 // pred_region
          %260 = dma.done %s252, 384
        $region44: #{_dino_forward.1} parent=35 // pred_fallthru
          _
        %s261 = sand.u32 %s79, 1
        %s262 = scalar_lea.sflag [#allocation7], %s261
        %s263 = sand.u32 %s79, 1
        %s264 = smul.addr %s263, 8
        %s265 = scalar_lea.vmem [#allocation6], %s264
        // Predicated region
        $region45: #{_dino_forward.1} parent=35 // pred_check
          %p266 = pneg %p92
        $region46: #{_dino_forward.1} parent=35 // pred_check_branch
          %268 = sbr.rel (%p266) target = $region48
        $region47: #{_dino_forward.1} parent=35 // pred_region
          %270 = dma.done %s262, 128
        $region48: #{_dino_forward.1} parent=35 // pred_fallthru
          _
        %271 = sfence
        %p272 = pneg %p40
        %p273 = pneg %p37
        %s274 = sand.u32 %s53, 1
        %s275 = scalar_lea.sflag [#allocation3], %s274
        %s276 = sand.u32 %s53, 1
        %s277 = smul.addr %s276, 24
        %s278 = scalar_lea.vmem [#allocation5], %s277
        %p279 = pneg %p66
        %p280 = pneg %p63
        %s281 = sand.u32 %s79, 1
        %s282 = scalar_lea.sflag [#allocation7], %s281
        %s283 = sand.u32 %s79, 1
        %s284 = smul.addr %s283, 8
        %s285 = scalar_lea.vmem [#allocation6], %s284
        %p286 = pneg %p92
        %p287 = pneg %p89
        %p288 = pneg %p113
        %p289 = pneg %p110
        %p290 = pneg %p139
        %p291 = pneg %p136
        %p292 = scmp.lt.s32.totalorder %s24, 1
        %s293 = scalar_select %p292, %s24, 1
        %s294 = smul.addr %s293, 8
        %s295 = scalar_lea.vmem %s4, %s294
        %p296 = pneg %p165
        %p297 = pneg %p162
        %p298 = scmp.lt.s32.totalorder %s24, 1
        %s299 = scalar_select %p298, %s24, 1
        %s300 = smul.addr %s299, 8
        %s301 = scalar_lea.vmem %s5, %s300
        %p302 = scmp.lt.s32.totalorder %s24, 1
        %s303 = scalar_select %p302, %s24, 1
        %s304 = smul.addr %s303, 8
        %s305 = scalar_lea.vmem %s4, %s304
        %p306 = scmp.lt.s32.totalorder %s24, 1
        %s307 = scalar_select %p306, %s24, 1
        %s308 = smul.addr %s307, 8
        %s309 = scalar_lea.vmem %s5, %s308
        %s310 = sld [smem:[#allocation2]]
        %v311 = vstv %s310
        %v312 = vrcp.pop %v311
        %v313 = vmul.f32 %v311, %v312
        %v314 = vsub.f32 1.0, %v313
        %v315 = vmul.f32 %v312, %v314
        %v316 = vadd.f32 %v312, %v315
        %vm317 = vweird.f32 %v311
        %vm318 = vweird.f32 %v312
        %vm319 = vmor %vm317, %vm318
        %v320 = vsel %vm319, %v312, %v316
        %v321 = vand.u32 2147483647, %v311
        %vm322 = vcmp.eq.f32.partialorder %v321, 8.507059e+37
        %v323 = vand.u32 %v311, 2147483648
        %v324 = vor.u32 1.1754944e-38, %v323
        %v325 = vsel %vm322, %v324, %v320
        %s326 = vtos %v325
        %s327 = sld [smem:[#allocation2 + $0x1]]
        %v328 = vstv %s327
        %v329 = vrcp.pop %v328
        %v330 = vmul.f32 %v328, %v329
        %v331 = vsub.f32 1.0, %v330
        %v332 = vmul.f32 %v329, %v331
        %v333 = vadd.f32 %v329, %v332
        %vm334 = vweird.f32 %v328
        %vm335 = vweird.f32 %v329
        %vm336 = vmor %vm334, %vm335
        %v337 = vsel %vm336, %v329, %v333
        %v338 = vand.u32 2147483647, %v328
        %vm339 = vcmp.eq.f32.partialorder %v338, 8.507059e+37
        %v340 = vand.u32 %v328, 2147483648
        %v341 = vor.u32 1.1754944e-38, %v340
        %v342 = vsel %vm339, %v341, %v337
        %s343 = vtos %v342
        %v344 = vld [vmem:[%s3] sm:$0x1]
        %v345 = vld [vmem:[%s265] sm:$0xf]
        %v346 = vunpack.c.l.bf16 %v345
        %v348 = vperm.slane %v344, 0
        %v350 = vsub.f32 %v346, %v348
        %v351 = vstv %s343
        %v352 = vmul.f32 %v350, %v351
        %353 = vmax.xlane.f32.xlu0 %v352
        %v354 = vpop.xlane.xlu0 %353
        %v355 = vsub.f32 %v352, %v354
        %v356 = vmul.f32 %v355, 1.442695
        %v357 = vpow.pop %v356
        %358 = vadd.xlane.f32.xlu0 %v357
        %v359 = vpop.xlane.xlu0 %358
        %s360 = scalar_lea.vmem %s265, 4 [#allocation6]
        %v361 = vld [vmem:[%s360] sm:$0xf]
        %v362 = vunpack.c.l.bf16 %v361
        %v363 = vadd.f32 %v346, %v362
        %v364 = vsub.f32 %v362, %v348
        %v365 = vmul.f32 %v364, %v351
        %366 = vmax.xlane.f32.xlu0 %v365
        %v367 = vpop.xlane.xlu0 %366
        %v368 = vsub.f32 %v365, %v367
        %v369 = vmul.f32 %v368, 1.442695
        %v370 = vpow.pop %v369
        %371 = vadd.xlane.f32.xlu0 %v370
        %v372 = vpop.xlane.xlu0 %371
        %v373 = vld [vmem:[%s255] sm:$0xf]
        %v374 = vunpack.c.l.bf16 %v373
        %v375 = vstv %s326
        %v376 = vmul.f32 %v374, %v375
        %377 = vmax.xlane.f32.xlu0 %v376
        %v378 = vpop.xlane.xlu0 %377
        %v379 = vsub.f32 %v376, %v378
        %v380 = vmul.f32 %v379, 1.442695
        %v381 = vpow.pop %v380
        %382 = vadd.xlane.f32.xlu0 %v381
        %v383 = vpop.xlane.xlu0 %382
        %v384 = vlog2.pop %v383
        %v385 = vmul.f32 %v384, 0.6931472
        %v386 = vsub.f32 %v379, %v385
        %v387 = vmul.f32 %v357, %v386
        %388 = vadd.xlane.f32.xlu0 %v387
        %v389 = vpop.xlane.xlu0 %388
        %s390 = scalar_lea.vmem %s255, 4 [#allocation5]
        %v391 = vld [vmem:[%s390] sm:$0xf]
        %v392 = vunpack.c.l.bf16 %v391
        %v393 = vmul.f32 %v392, %v375
        %394 = vmax.xlane.f32.xlu0 %v393
        %v395 = vpop.xlane.xlu0 %394
        %v396 = vsub.f32 %v393, %v395
        %v397 = vmul.f32 %v396, 1.442695
        %v398 = vpow.pop %v397
        %399 = vadd.xlane.f32.xlu0 %v398
        %v400 = vpop.xlane.xlu0 %399
        %v401 = vlog2.pop %v400
        %v402 = vmul.f32 %v401, 0.6931472
        %v403 = vsub.f32 %v396, %v402
        %v404 = vadd.f32 %v386, %v403
        %v405 = vmul.f32 %v370, %v403
        %406 = vadd.xlane.f32.xlu0 %v405
        %v407 = vpop.xlane.xlu0 %406
        %s408 = scalar_lea.vmem %s255, 8 [#allocation5]
        %v409 = vld [vmem:[%s408] sm:$0xf]
        %v410 = vunpack.c.l.bf16 %v409
        %v411 = vmul.f32 %v410, %v375
        %412 = vmax.xlane.f32.xlu0 %v411
        %v413 = vpop.xlane.xlu0 %412
        %v414 = vsub.f32 %v411, %v413
        %v415 = vmul.f32 %v414, 1.442695
        %v416 = vpow.pop %v415
        %417 = vadd.xlane.f32.xlu0 %v416
        %v418 = vpop.xlane.xlu0 %417
        %v419 = vlog2.pop %v418
        %v420 = vmul.f32 %v419, 0.6931472
        %v421 = vsub.f32 %v414, %v420
        %v422 = vadd.f32 %v404, %v421
        %s423 = scalar_lea.vmem %s255, 12 [#allocation5]
        %v424 = vld [vmem:[%s423] sm:$0xf]
        %v425 = vunpack.c.l.bf16 %v424
        %v426 = vmul.f32 %v425, %v375
        %427 = vmax.xlane.f32.xlu0 %v426
        %v428 = vpop.xlane.xlu0 %427
        %v429 = vsub.f32 %v426, %v428
        %v430 = vmul.f32 %v429, 1.442695
        %v431 = vpow.pop %v430
        %432 = vadd.xlane.f32.xlu0 %v431
        %v433 = vpop.xlane.xlu0 %432
        %v434 = vlog2.pop %v433
        %v435 = vmul.f32 %v434, 0.6931472
        %v436 = vsub.f32 %v429, %v435
        %v437 = vadd.f32 %v422, %v436
        %s438 = scalar_lea.vmem %s255, 16 [#allocation5]
        %v439 = vld [vmem:[%s438] sm:$0xf]
        %v440 = vunpack.c.l.bf16 %v439
        %v441 = vmul.f32 %v440, %v375
        %442 = vmax.xlane.f32.xlu0 %v441
        %v443 = vpop.xlane.xlu0 %442
        %v444 = vsub.f32 %v441, %v443
        %v445 = vmul.f32 %v444, 1.442695
        %v446 = vpow.pop %v445
        %447 = vadd.xlane.f32.xlu0 %v446
        %v448 = vpop.xlane.xlu0 %447
        %v449 = vlog2.pop %v448
        %v450 = vmul.f32 %v449, 0.6931472
        %v451 = vsub.f32 %v444, %v450
        %v452 = vadd.f32 %v437, %v451
        %s453 = scalar_lea.vmem %s255, 20 [#allocation5]
        %v454 = vld [vmem:[%s453] sm:$0xf]
        %v455 = vunpack.c.l.bf16 %v454
        %v456 = vmul.f32 %v455, %v375
        %457 = vmax.xlane.f32.xlu0 %v456
        %v458 = vpop.xlane.xlu0 %457
        %v459 = vsub.f32 %v456, %v458
        %v460 = vmul.f32 %v459, 1.442695
        %v461 = vpow.pop %v460
        %462 = vadd.xlane.f32.xlu0 %v461
        %v463 = vpop.xlane.xlu0 %462
        %v464 = vlog2.pop %v463
        %v465 = vmul.f32 %v464, 0.6931472
        %v466 = vsub.f32 %v459, %v465
        %v467 = vadd.f32 %v452, %v466
        %v468 = vmul.f32 %v357, %v467
        %469 = vadd.xlane.f32.xlu0 %v468
        %v470 = vpop.xlane.xlu0 %469
        %v471 = vsub.f32 %v389, %v470
        %v472 = vrcp.pop %v359
        %v473 = vmul.f32 %v359, %v472
        %v474 = vsub.f32 1.0, %v473
        %v475 = vmul.f32 %v472, %v474
        %v476 = vadd.f32 %v472, %v475
        %vm477 = vweird.f32 %v359
        %vm478 = vweird.f32 %v472
        %vm479 = vmor %vm477, %vm478
        %v480 = vsel %vm479, %v472, %v476
        %v481 = vand.u32 2147483647, %v359
        %vm482 = vcmp.eq.f32.partialorder %v481, 8.507059e+37
        %v483 = vand.u32 %v359, 2147483648
        %v484 = vor.u32 1.1754944e-38, %v483
        %v485 = vsel %vm482, %v484, %v480
        %v486 = vmul.f32 %v471, %v485
        %v487 = vadd.f32 %v486, 0.0
        %v488 = vmul.f32 %v370, %v467
        %489 = vadd.xlane.f32.xlu0 %v488
        %v490 = vpop.xlane.xlu0 %489
        %v491 = vsub.f32 %v407, %v490
        %v492 = vrcp.pop %v372
        %v493 = vmul.f32 %v372, %v492
        %v494 = vsub.f32 1.0, %v493
        %v495 = vmul.f32 %v492, %v494
        %v496 = vadd.f32 %v492, %v495
        %vm497 = vweird.f32 %v372
        %vm498 = vweird.f32 %v492
        %vm499 = vmor %vm497, %vm498
        %v500 = vsel %vm499, %v492, %v496
        %v501 = vand.u32 2147483647, %v372
        %vm502 = vcmp.eq.f32.partialorder %v501, 8.507059e+37
        %v503 = vand.u32 %v372, 2147483648
        %v504 = vor.u32 1.1754944e-38, %v503
        %v505 = vsel %vm502, %v504, %v500
        %v506 = vmul.f32 %v491, %v505
        %v507 = vadd.f32 %v487, %v506
        %vm508 = vcmask 7168
        %509 = vst.msk [vmem:[%s305] sm:$0xff] %vm508, %v507
        %v510 = vadd.f32 %v363, 0.0
        %511 = vst [vmem:[%s309] sm:$0xff] %v510
        %p512 = scmp.lt.s32.totalorder %s24, 1
        %s513 = scalar_select %p512, %s24, 1
        %s514 = smul.addr %s513, 8
        %s515 = scalar_lea.vmem %s4, %s514
        %p516 = scmp.lt.s32.totalorder %s24, 1
        %s517 = scalar_select %p516, %s24, 1
        %s518 = smul.addr %s517, 8
        %s519 = scalar_lea.vmem %s5, %s518
        // Predicated region
        $region49: #{_dino_forward.1} parent=35 // pred_check
          %p520 = pneg %p136
        $region50: #{_dino_forward.1} parent=35 // pred_check_branch
          %522 = sbr.rel (%p520) target = $region52
        $region51: #{_dino_forward.1} parent=35 // pred_region
          _
        $region52: #{_dino_forward.1} parent=35 // pred_fallthru
          _
        // Predicated region
        $region53: #{_dino_forward.1} parent=35 // pred_check
          %p523 = pneg %p162
        $region54: #{_dino_forward.1} parent=35 // pred_check_branch
          %525 = sbr.rel (%p523) target = $region56
        $region55: #{_dino_forward.1} parent=35 // pred_region
          _
        $region56: #{_dino_forward.1} parent=35 // pred_fallthru
          _
      $region36: #{_dino_forward.1} parent=5 // pred_fallthru
        _
      %p526 = scmp.le.s32.totalorder 2, %s19
      // Predicated region
      $region57: #{_dino_forward.1} parent=5 // pred_check
        %p527 = pneg %p526
      $region58: #{_dino_forward.1} parent=5 // pred_check_branch
        %529 = sbr.rel (%p527) target = $region60
      $region59: #{_dino_forward.1} parent=5 // pred_region
        %s530 = ssub.s32 %s19, 2
        // Predicated region
        $region61: #{_dino_forward.1} parent=59 // pred_check
          %p531 = pneg %p142
        $region62: #{_dino_forward.1} parent=59 // pred_check_branch
          %533 = sbr.rel (%p531) target = $region64
        $region63: #{_dino_forward.1} parent=59 // pred_region
          %p534 = scmp.lt.s32.totalorder %s25, 1
          %s535 = scalar_select %p534, %s25, 1
          %s536 = smul.addr %s535, 8
          %s537 = scalar_lea.vmem %s4, %s536
        $region64: #{_dino_forward.1} parent=59 // pred_fallthru
          _
        // Predicated region
        $region65: #{_dino_forward.1} parent=59 // pred_check
          %p538 = pneg %p168
        $region66: #{_dino_forward.1} parent=59 // pred_check_branch
          %540 = sbr.rel (%p538) target = $region68
        $region67: #{_dino_forward.1} parent=59 // pred_region
          %p541 = scmp.lt.s32.totalorder %s25, 1
          %s542 = scalar_select %p541, %s25, 1
          %s543 = smul.addr %s542, 8
          %s544 = scalar_lea.vmem %s5, %s543
        $region68: #{_dino_forward.1} parent=59 // pred_fallthru
          _
      $region60: #{_dino_forward.1} parent=5 // pred_fallthru
        _
    $region6: #{_dino_forward.1} parent=1 // loop_footer
      %s23 = sadd.s32 1, %s19
    $region7: #{_dino_forward.1} parent=1 // loop_footer_branch
      %18 = sbr.rel target = $region3
    $region8: #{_dino_forward.1} parent=1 // loop_exit
      _
    %545 = vsyncpa [#allocation3], 1
    %s546 = scalar_lea.sflag [#allocation3], 1
    %547 = vsyncpa %s546, 1
    %548 = vsyncpa [#allocation7], 1
    %s549 = scalar_lea.sflag [#allocation7], 1
    %550 = vsyncpa %s549, 1
    %551 = vsyncpa [#allocation4], 1
    %s552 = scalar_lea.sflag [#allocation4], 1
    %553 = vsyncpa %s552, 1

</llo_original>
